<compile_context>
chip_gen: v7x
topology: tpu7x:2x2x1
jax: 0.10.0
libtpu: 0.0.40
codegen_flags: <defaults>
</compile_context>

<pallas_src>
import jax
import jax.numpy as jnp
from jax import lax
from jax.experimental import pallas as pl
from jax.experimental.pallas import tpu as pltpu


def _round_up(x, m):
    return ((x + m - 1) // m) * m


# ----------------------------- Pallas kernel --------------------------------
def repblock_kernel(pt_ref, w_ref, b_ref, o_ref):
    # pt_ref: (K_pad, TM)  bf16  -- transposed im2col patches, M on lanes
    # w_ref : (Cout, K_pad) bf16 -- fused (BN-folded, 3-branch-summed) weight
    # b_ref : (Cout, 1)    f32   -- fused bias
    # o_ref : (Cout, TM)   f32   -- lane-dense output tile
    acc = jnp.dot(w_ref[...], pt_ref[...], preferred_element_type=jnp.float32)
    acc = acc + b_ref[...]                      # broadcast (Cout,1) -> (Cout,TM)
    o_ref[...] = jnp.maximum(acc, 0.0)          # ReLU


def repblock_pallas(pt, w2d, bias_col, tile_m):
    K_pad, M_pad = pt.shape
    C_out = w2d.shape[0]
    grid = (M_pad // tile_m,)
    return pl.pallas_call(
        repblock_kernel,
        out_shape=jax.ShapeDtypeStruct((C_out, M_pad), jnp.float32),
        grid=grid,
        in_specs=[
            pl.BlockSpec((K_pad, tile_m), lambda i: (0, i)),   # patches: tiled over M
            pl.BlockSpec((C_out, K_pad), lambda i: (0, 0)),    # weight: VMEM-resident
            pl.BlockSpec((C_out, 1), lambda i: (0, 0)),        # bias: VMEM-resident
        ],
        out_specs=pl.BlockSpec((C_out, tile_m), lambda i: (0, i)),
        compiler_params=pltpu.CompilerParams(
            dimension_semantics=("parallel",)),
    )(pt, w2d, bias_col)


# ----------------------------- Glue (plain JAX) ------------------------------
def fuse_conv_bn(w, gamma, beta, mean, var, eps=1e-5):
    """Fold eval-mode BatchNorm1d into a Conv1d weight (C_out, C_in, K)."""
    std = jnp.sqrt(var + eps)
    t = (gamma / std).reshape(-1, 1, 1)
    return w * t, beta - mean * gamma / std


def build_patches_T(x, K, pad, stride):
    """x: (N, C, L) -> Pt: (C*K, N*L_out), row order (ci, k), length axis last."""
    N, C, L = x.shape
    xp = jnp.pad(x, ((0, 0), (0, 0), (pad, pad)))
    L_out = (L + 2 * pad - K) // stride + 1
    taps = []
    for k in range(K):                                   # K is small & static
        taps.append(lax.slice(xp, (0, 0, k),
                              (N, C, k + stride * (L_out - 1) + 1),
                              (1, 1, stride)))           # (N, C, L_out)
    t = jnp.stack(taps, axis=2)                          # (N, C, K, L_out)
    pt = t.transpose(1, 2, 0, 3).reshape(C * K, N * L_out)   # lane dim stays last
    return pt, L_out


def rep_block_forward(x, params, stride, kernel_size, padding):
    """Non-deploy RepBlock forward, flag_3=True: relu(brb_5 + brb_3 + brb_1)."""
    N, C_in, L = x.shape
    K5 = kernel_size

    # BN-fold each branch, then re-parameterize the three branches into a single
    # K5 conv (identical math to the module's _get_equivalent_kernel_bias).
    # NOTE: assumes padding >= 2, as in the module's K5/pad configuration.
    w5, b5 = fuse_conv_bn(*params["brb_5"])
    w3, b3 = fuse_conv_bn(*params["brb_3"])
    w1, b1 = fuse_conv_bn(*params["brb_1"])
    w = (w5
         + jnp.pad(w3, ((0, 0), (0, 0), (1, 1)))
         + jnp.pad(w1, ((0, 0), (0, 0), (2, 2))))
    b = b5 + b3 + b1
    C_out = w.shape[0]

    # Lane-dense transposed im2col patches.
    pt, L_out = build_patches_T(x, K5, padding, stride)

    # Pad contraction dim to a multiple of 8 sublanes; pad M to a multiple of TM.
    K_flat = C_in * K5
    K_pad = _round_up(K_flat, 8)
    M = N * L_out
    tile_m = min(512, _round_up(M, 128))      # multiple of 128, VMEM-friendly
    M_pad = _round_up(M, tile_m)

    pt = jnp.pad(pt, ((0, K_pad - K_flat), (0, M_pad - M)))
    w2d = jnp.pad(w.reshape(C_out, K_flat), ((0, 0), (0, K_pad - K_flat)))

    out = repblock_pallas(
        pt.astype(jnp.bfloat16),
        w2d.astype(jnp.bfloat16),
        b.reshape(C_out, 1).astype(jnp.float32),
        tile_m)                                           # (C_out, M_pad) f32

    out = out[:, :M].reshape(C_out, N, L_out).transpose(1, 0, 2)  # (N, Cout, Lout)
    return out


# ----------------------------- Reference (for check) ------------------------
def conv1d_ref(x, w, b, stride, pad):
    y = lax.conv_general_dilated(
        x, w, window_strides=(stride,), padding=[(pad, pad)],
        dimension_numbers=("NCH", "OIH", "NCH"))
    return y + b.reshape(1, -1, 1)


def rep_block_ref(x, params, stride, padding):
    w5, b5 = fuse_conv_bn(*params["brb_5"])
    w3, b3 = fuse_conv_bn(*params["brb_3"])
    w1, b1 = fuse_conv_bn(*params["brb_1"])
    y = (conv1d_ref(x, w5, b5, stride, padding)
         + conv1d_ref(x, w3, b3, stride, padding - 1)
         + conv1d_ref(x, w1, b1, stride, padding - 2))
    return jnp.maximum(y, 0.0)


# --------------------------------- main --------------------------------------
if __name__ == "__main__":
    # Module config: RepBlock(input_channel=4, output_channel=8, kernel_size=5,
    #                          stride=2, padding=2, flag_3=True, deploy=False)
    C_in, C_out = 4, 8
    kernel_size, stride, padding = 5, 2, 2
    N, L = 2, 16

    key = jax.random.PRNGKey(0)
    ks = jax.random.split(key, 16)

    def make_branch(kw, kb, kg, kbn, km, kv, K):
        w = 0.1 * jax.random.normal(kw, (C_out, C_in, K), jnp.float32)
        gamma = 1.0 + 0.1 * jax.random.normal(kg, (C_out,), jnp.float32)
        beta = 0.1 * jax.random.normal(kbn, (C_out,), jnp.float32)
        mean = 0.05 * jax.random.normal(km, (C_out,), jnp.float32)
        var = 1.0 + 0.1 * jax.random.uniform(kv, (C_out,), jnp.float32)
        return (w, gamma, beta, mean, var)

    params = {
        "brb_5": make_branch(ks[0], ks[1], ks[2], ks[3], ks[4], ks[5], kernel_size),
        "brb_3": make_branch(ks[6], ks[7], ks[8], ks[9], ks[10], ks[11], kernel_size - 2),
        "brb_1": make_branch(ks[12], ks[13], ks[14], ks[15], ks[3], ks[7], kernel_size - 4),
    }

    x = jax.random.normal(jax.random.PRNGKey(1), (N, C_in, L), jnp.float32)

    out = rep_block_forward(x, params, stride, kernel_size, padding)
    out = jax.block_until_ready(out)

    ref = rep_block_ref(x, params, stride, padding)
    L_out = (L + 2 * padding - kernel_size) // stride + 1
    assert out.shape == ref.shape == (N, C_out, L_out)
    # bf16 inputs / f32 accumulation -> slightly loosened tolerance vs f32 ref.
    assert jnp.allclose(out, ref, atol=3e-2, rtol=3e-2), "mismatch vs reference"

    print("KERNEL_OK")
</pallas_src>

<mosaic_0001>
module attributes {stable_mosaic.version = 11 : i64} {
  func.func @repblock_kernel(%arg0: i32, %arg1: memref<24x128xbf16, #tpu.memory_space<vmem>>, %arg2: memref<8x24xbf16, #tpu.memory_space<vmem>>, %arg3: memref<8x1xf32, #tpu.memory_space<vmem>>, %arg4: memref<8x128xf32, #tpu.memory_space<vmem>>) attributes {dimension_semantics = [#tpu.dimension_semantics<parallel>], iteration_bounds = array<i64: 1>, scalar_prefetch = 0 : i64, scratch_operands = 0 : i64, tpu.core_type = #tpu.core_type<tc>, window_params = [{transform_indices = @transform_0, window_bounds = array<i64: 24, 128>}, {pipeline_mode = #tpu.pipeline_mode<synchronous>, transform_indices = @transform_1, window_bounds = array<i64: 8, 24>}, {pipeline_mode = #tpu.pipeline_mode<synchronous>, transform_indices = @transform_2, window_bounds = array<i64: 8, 1>}, {transform_indices = @transform_3, window_bounds = array<i64: 8, 128>}]} {
    %c0 = arith.constant 0 : index
    %c0_0 = arith.constant 0 : index
    %0 = vector.load %arg2[%c0, %c0_0] : memref<8x24xbf16, #tpu.memory_space<vmem>>, vector<8x24xbf16>
    %c0_1 = arith.constant 0 : index
    %c0_2 = arith.constant 0 : index
    %1 = vector.load %arg1[%c0_1, %c0_2] : memref<24x128xbf16, #tpu.memory_space<vmem>>, vector<24x128xbf16>
    %cst = arith.constant dense<0.000000e+00> : vector<8x128xf32>
    %2 = tpu.matmul %0, %1, %cst {dimension_numbers = #tpu.dot_dimension_numbers<[1], [0], [0], [1], [0, 0, 1, 1], [], []>} : vector<8x24xbf16>, vector<24x128xbf16>, vector<8x128xf32> -> vector<8x128xf32>
    %c0_3 = arith.constant 0 : index
    %c0_4 = arith.constant 0 : index
    %3 = vector.load %arg3[%c0_3, %c0_4] : memref<8x1xf32, #tpu.memory_space<vmem>>, vector<8x1xf32>
    %4 = vector.broadcast %3 : vector<8x1xf32> to vector<8x128xf32>
    %5 = arith.addf %2, %4 : vector<8x128xf32>
    %cst_5 = arith.constant 0.000000e+00 : f32
    %6 = vector.broadcast %cst_5 : f32 to vector<8x128xf32>
    %7 = arith.maximumf %5, %6 : vector<8x128xf32>
    %c0_6 = arith.constant 0 : index
    %c0_7 = arith.constant 0 : index
    %8 = vector.load %arg4[%c0_6, %c0_7] : memref<8x128xf32, #tpu.memory_space<vmem>>, vector<8x128xf32>
    tpu.vector_store %arg4[%c0_6, %c0_7], %7 {strides = array<i32>} : memref<8x128xf32, #tpu.memory_space<vmem>>, vector<8x128xf32>,
    return
  }
  func.func @transform_0(%arg0: i32) -> (i32, i32) {
    %c0_i32 = arith.constant 0 : i32
    %c0_i32_0 = arith.constant 0 : i32
    return %c0_i32, %arg0 : i32, i32
  }
  func.func @transform_1(%arg0: i32) -> (i32, i32) {
    %c0_i32 = arith.constant 0 : i32
    %c0_i32_0 = arith.constant 0 : i32
    %c0_i32_1 = arith.constant 0 : i32
    return %c0_i32, %c0_i32_0 : i32, i32
  }
  func.func @transform_2(%arg0: i32) -> (i32, i32) {
    %c0_i32 = arith.constant 0 : i32
    %c0_i32_0 = arith.constant 0 : i32
    %c0_i32_1 = arith.constant 0 : i32
    return %c0_i32, %c0_i32_0 : i32, i32
  }
  func.func @transform_3(%arg0: i32) -> (i32, i32) {
    %c0_i32 = arith.constant 0 : i32
    %c0_i32_0 = arith.constant 0 : i32
    return %c0_i32, %arg0 : i32, i32
  }
}

</mosaic_0001>

<llo_original>
// kernel: tpu_custom_call.1
$region0: #{tpu_custom_call.1}
  #allocation0 [shape = 'u32[]', space=smem, size = 0x4, offset = 0x4, fixed_abs, tag = 'smem constant byte address 0x4 - core index']
  #allocation1 [shape = 'u32[144,128]{1,0:T(1,128)}', space=vmem, size = 0x12000, scoped, tag = 'internal scratch']
  %s0 = inlined_call_operand.hbm [shape: bf16[24,128], index: 0, kind: input, shape index: {}]
  %s1 = inlined_call_operand.vmem [shape: bf16[8,24], index: 1, kind: input, shape index: {}]
  %s2 = inlined_call_operand.vmem [shape: f32[8,1], index: 2, kind: input, shape index: {}]
  %s3 = inlined_call_operand.hbm [shape: f32[8,128], index: 3, kind: output, shape index: {}]
  %s4 = sld [smem:[#allocation0]]
  $region26: #{tpu_custom_call.1} parent=0
    _
  %s6 = ssub.s32 1, %s4
  %s7 = scalar_select 0, %s6, %s4
  $region1: #{tpu_custom_call.1} parent=0
    #allocation2 [shape = 'u8[6144]{0}', space=vmem, size = 0x1800, scoped, tag = 'input window, operand 0, single buffered']
    #allocation3 [shape = 's32[1]{0}', space=sflag, size = 0x4, scoped, tag = 'scoped memory for tpu_custom_call.1']
    #allocation4 [shape = 's32[1]{0}', space=sflag, size = 0x4, scoped, tag = 'scoped memory for tpu_custom_call.1']
    #allocation5 [shape = 'u8[4096]{0}', space=vmem, size = 0x1000, scoped, tag = 'output window, operand 0, single buffered']
    %8 = vsyncpa [#allocation3], 0
    %9 = vsyncpa [#allocation4], 0
    // Predicated region
    $region2: #{tpu_custom_call.1} parent=1 // pred_check
      _
    $region3: #{tpu_custom_call.1} parent=1 // pred_check_branch
      %11 = sbr.rel (0) target = $region5
    $region4: #{tpu_custom_call.1} parent=1 // pred_region
      %s13 = ssub.s32 192, 192
      %14 = vsyncadd [#allocation3], %s13
      %s15 = sshll.u32 [#allocation2], 4
      %s16 = int_to_ptr.vmem [resolvable:$true] %s15
      %21 = dma.hbm_to_vmem [thread:$0]  %s0, 192, %s16, [#allocation3], 64, 64, 4
    $region5: #{tpu_custom_call.1} parent=1 // pred_fallthru
      _
    // Predicated region
    $region6: #{tpu_custom_call.1} parent=1 // pred_check
      _
    $region7: #{tpu_custom_call.1} parent=1 // pred_check_branch
      %23 = sbr.rel (0) target = $region9
    $region8: #{tpu_custom_call.1} parent=1 // pred_region
      _
    $region9: #{tpu_custom_call.1} parent=1 // pred_fallthru
      _
    // Predicated region
    $region10: #{tpu_custom_call.1} parent=1 // pred_check
      _
    $region11: #{tpu_custom_call.1} parent=1 // pred_check_branch
      %25 = sbr.rel (0) target = $region13
    $region12: #{tpu_custom_call.1} parent=1 // pred_region
      _
    $region13: #{tpu_custom_call.1} parent=1 // pred_fallthru
      _
    // Predicated region
    $region14: #{tpu_custom_call.1} parent=1 // pred_check
      _
    $region15: #{tpu_custom_call.1} parent=1 // pred_check_branch
      %27 = sbr.rel (0) target = $region17
    $region16: #{tpu_custom_call.1} parent=1 // pred_region
      %28 = dma.done [#allocation3], 192
    $region17: #{tpu_custom_call.1} parent=1 // pred_fallthru
      _
    %v30 = vld [vmem:[%s1] sm:$0xf]
    %v31 = vld [vmem:[#allocation2] sm:$0xf]
    %v32 = vld [vmem:[#allocation2 + $0x4] sm:$0xf]
    %v33 = vld [vmem:[#allocation2 + $0x8] sm:$0xf]
    %v34 = vld [vmem:[%s2] sm:$0xff]
    %36 = vset.pattern.permute.xlu0 0
    %37 = vperm.xlu0 %36, %v34
    %v38 = vpop.permute.xlu0 %37
    %v43 = vunpack.c.l.b16 %v31
    %v44 = vunpack.c.l.b16 %v32
    %v45 = vunpack.c.l.b16 %v33
    %v46 = vpack.c.b16 %v44, %v43
    %v47 = vpack.c.b16 %v45, %v45
    %vm49 = vcmask 195584
    %v51 = vsel %vm49, %v30, 0
    %vm53 = vcmask 1043456
    %v55 = vsel %vm53, %v47, 0
    %57 = vmatprep.subr.bf16.mxu0 0
    %58 = vmatpush1.bf16.msra.mxu0 %v46
    %59 = vmatprep.subr.bf16.mxu0 0
    %60 = vmatpush1.bf16.msra.mxu0 %v55
    %61 = vmatprep.subr.bf16.mxu0 0
    %62 = vmatpush1.bf16.msra.mxu0 0
    %63 = vmatprep.subr.bf16.mxu0 0
    %64 = vmatpush1.bf16.msra.mxu0 0
    %65 = vmatprep.subr.bf16.mxu0 0
    %66 = vmatpush1.bf16.msra.mxu0 0
    %67 = vmatprep.subr.bf16.mxu0 0
    %68 = vmatpush1.bf16.msra.mxu0 0
    %69 = vmatprep.subr.bf16.mxu0 0
    %70 = vmatpush1.bf16.msra.mxu0 0
    %71 = vmatprep.subr.bf16.mxu0 0
    %72 = vmatpush1.bf16.msra.mxu0 0
    %73 = vmatprep.subr.bf16.mxu0 0
    %74 = vmatpush1.bf16.msra.mxu0 0
    %75 = vmatprep.subr.bf16.mxu0 0
    %76 = vmatpush1.bf16.msra.mxu0 0
    %77 = vmatprep.subr.bf16.mxu0 0
    %78 = vmatpush1.bf16.msra.mxu0 0
    %79 = vmatprep.subr.bf16.mxu0 0
    %80 = vmatpush1.bf16.msra.mxu0 0
    %81 = vmatprep.subr.bf16.mxu0 0
    %82 = vmatpush1.bf16.msra.mxu0 0
    %83 = vmatprep.subr.bf16.mxu0 0
    %84 = vmatpush1.bf16.msra.mxu0 0
    %85 = vmatprep.subr.bf16.mxu0 0
    %86 = vmatpush1.bf16.msra.mxu0 0
    %87 = vmatprep.subr.bf16.mxu0 0
    %88 = vmatpush1.bf16.msra.mxu0 0
    %89 = vmatprep.mubr.bf16.mxu0 0
    %90 = vmatmul.mubr.bf16.gmra.mrb[0].mxu0 %v51
    %v91 = vpop.f32.mrb[0].mxu0
    %v92 = vadd.f32 %v38, %v91
    %v93 = vpop.f32.mrb[0].mxu0
    %v94 = vpop.f32.mrb[0].mxu0
    %v95 = vpop.f32.mrb[0].mxu0
    %96 = vdwg.mxu0
    %v97 = vmax.f32 %v92, 0.0
    %98 = vst [vmem:[#allocation5] sm:$0xff] %v97
    // Predicated region
    $region18: #{tpu_custom_call.1} parent=1 // pred_check
      _
    $region19: #{tpu_custom_call.1} parent=1 // pred_check_branch
      %100 = sbr.rel (0) target = $region21
    $region20: #{tpu_custom_call.1} parent=1 // pred_region
      %s102 = ssub.s32 128, 128
      %103 = vsyncadd [#allocation4], %s102
      %s105 = sshll.u32 [#allocation5], 4
      %s106 = int_to_ptr.vmem [resolvable:$true] %s105
      %108 = dma.vmem_to_hbm [thread:$0]  %s106, 128, %s3, [#allocation4]
    $region21: #{tpu_custom_call.1} parent=1 // pred_fallthru
      _
    // Predicated region
    $region22: #{tpu_custom_call.1} parent=1 // pred_check
      _
    $region23: #{tpu_custom_call.1} parent=1 // pred_check_branch
      %110 = sbr.rel (0) target = $region25
    $region24: #{tpu_custom_call.1} parent=1 // pred_region
      %111 = dma.done [#allocation4], 128
    $region25: #{tpu_custom_call.1} parent=1 // pred_fallthru
      _
    %112 = vsyncpa [#allocation3], 1
    %113 = vsyncpa [#allocation4], 1

</llo_original>
